<compile_context>
chip_gen: v5e
topology: v5e:2x2
jax: 0.10.0
libtpu: 0.0.40
codegen_flags: <defaults>
</compile_context>

<pallas_src>
import functools

import jax
import jax.numpy as jnp
from jax.experimental import pallas as pl
from jax.experimental.pallas import tpu as pltpu


def _round_up(x, m):
    return (x + m - 1) // m * m


# ------------------------------------------------------------------ fused kernel
def _cross_attention_kernel(x_ref, w_ref, b_ref, o_ref, *, C, KQ, KK, TQ):
    f32 = jnp.float32
    bf16 = jnp.bfloat16

    qi = pl.program_id(1)
    q0 = pl.multiple_of(qi * TQ, TQ)

    x_all = x_ref[...]                               # (C, N)  f32, all pixels (keys/values)
    x_tile = x_ref[:, pl.ds(q0, TQ)]                 # (C, TQ) f32, this step's query pixels

    w = w_ref[...]                                   # (KTOT, C) bf16 fused weight slab
    b = b_ref[...]                                   # (KTOT, 1) f32 fused bias column

    # --- projections (biases via lane-broadcast add; no ones-row concat on x) -------
    # k / gamma*v / ones over ALL pixels:
    kvo = jnp.dot(w[KQ:], x_all.astype(bf16),
                  preferred_element_type=f32) + b[KQ:]               # (KK+C+pad, N)
    k = kvo[0:KK]                                    # (KK, N); pad rows exactly 0
    vo = kvo[KK:]                                    # (C+pad, N): [0:C]=gamma*v, row C = ones

    # q only for this tile's pixel columns:
    q = jnp.dot(w[0:KQ], x_tile.astype(bf16),
                preferred_element_type=f32) + b[0:KQ]                # (KQ, TQ)

    # --- attention logits + softmax numerator ---------------------------------------
    # logits[i, j] = sum_c q[c, i] * k[c, j]   (contract dim 0 of both -> cheap 8-row
    # transpose; contraction depth is only KQ=8, MXU has huge slack here)
    logits = jax.lax.dot_general(q, k, (((0,), (0,)), ((), ())),
                                 preferred_element_type=f32)         # (TQ, N)
    m = jnp.max(logits, axis=-1, keepdims=True)
    e = jnp.exp(logits - m)                          # f32 exp (portable to v5e EUP)

    # --- un-normalized features AND denominator from ONE matmul ---------------------
    # fa[r, i] = sum_j vo[r, j] * e[i, j]; rows [0:C] = gamma * feat_un, row C = denom
    # (already lane-oriented, so no transpose and no N^2 normalize multiply).
    fa = jax.lax.dot_general(vo.astype(bf16), e.astype(bf16),
                             (((1,), (1,)), ((), ())),
                             preferred_element_type=f32)             # (C+pad, TQ)
    inv = pl.reciprocal(fa[C:C + 1], approx=True)                    # (1, TQ)

    # gamma already folded into v -> per-column normalize + residual add
    o_ref[...] = fa[0:C] * inv + x_tile


# ---------------------------------------------------------------------- wrapper
def cross_attention_forward(x, wq, bq, wk, bk, wv, bv, gamma):
    """x: (B, C, H, W). wq/wk: (C//8, C), wv: (C, C) (1x1 conv weights), biases 1-D,
    gamma scalar. Returns gamma * attention(x) + x, shape (B, C, H, W)."""
    B, C, H, W = x.shape
    N = H * W
    Cq = wq.shape[0]
    f32 = jnp.float32

    KQ = _round_up(Cq, 8)                 # sublane-aligned q channel block
    KK = KQ                               # sublane-aligned k channel block
    VB = _round_up(C + 1, 8)              # gamma*v rows + ones row (+ zero pad)
    KTOT = KQ + KK + VB

    # query-pixel tile: lane-dense output stores, >1 grid step per core, smaller logits
    TQ = 128 if (N % 128 == 0 and N > 128) else N
    n_q = N // TQ

    # gamma * (Wv x + bv) == (gamma*Wv) x + gamma*bv : fold gamma into value weights
    wv_g = (gamma * wv).astype(f32)
    bv_g = (gamma * bv).astype(f32)

    # fused weight slab: rows [0:Cq]=Wq, [KQ:KQ+Cq]=Wk, [KQ+KK:KQ+KK+C]=gamma*Wv,
    # row KQ+KK+C = 0 weights (bias 1 -> all-ones projection row that yields the
    # softmax denominator straight out of the feature matmul). All pad rows are zero.
    w_all = jnp.zeros((KTOT, C), f32)
    w_all = w_all.at[0:Cq].set(wq.astype(f32))
    w_all = w_all.at[KQ:KQ + Cq].set(wk.astype(f32))
    w_all = w_all.at[KQ + KK:KQ + KK + C].set(wv_g)
    w_all = w_all.astype(jnp.bfloat16)

    b_all = jnp.zeros((KTOT, 1), f32)
    b_all = b_all.at[0:Cq, 0].set(bq.astype(f32))
    b_all = b_all.at[KQ:KQ + Cq, 0].set(bk.astype(f32))
    b_all = b_all.at[KQ + KK:KQ + KK + C, 0].set(bv_g)
    b_all = b_all.at[KQ + KK + C, 0].set(1.0)        # ones row -> softmax denominator

    x3 = x.reshape(B, C, N).astype(f32)              # free view when x is already f32

    kernel = functools.partial(_cross_attention_kernel, C=C, KQ=KQ, KK=KK, TQ=TQ)
    flops = 2 * B * n_q * ((KTOT - KQ) * C * N + KQ * C * TQ
                           + KQ * TQ * N + (C + 8) * TQ * N)
    cost = pl.CostEstimate(flops=int(flops),
                           transcendentals=int(B * N * N),
                           bytes_accessed=int(2 * B * C * N * 4 + KTOT * (C + 1) * 4))

    out = pl.pallas_call(
        kernel,
        out_shape=jax.ShapeDtypeStruct((B, C, N), f32),
        grid=(B, n_q),
        in_specs=[
            pl.BlockSpec((None, C, N), lambda b, qi: (b, 0, 0)),   # x: once per batch
            pl.BlockSpec((KTOT, C), lambda b, qi: (0, 0)),         # fused weights
            pl.BlockSpec((KTOT, 1), lambda b, qi: (0, 0)),         # fused biases
        ],
        out_specs=pl.BlockSpec((None, C, TQ), lambda b, qi: (b, 0, qi)),
        compiler_params=pltpu.CompilerParams(
            dimension_semantics=("parallel", "parallel")),
        cost_estimate=cost,
    )(x3, w_all, b_all)
    return out.reshape(B, C, H, W)


# ------------------------------------------------------------ pure-JAX reference
def cross_attention_reference(x, wq, bq, wk, bk, wv, bv, gamma):
    B, C, H, W = x.shape
    N = H * W
    xf = x.reshape(B, C, N)
    with jax.default_matmul_precision("float32"):
        q = jnp.einsum("oc,bcn->bon", wq, xf) + bq[None, :, None]
        k = jnp.einsum("oc,bcn->bon", wk, xf) + bk[None, :, None]
        v = jnp.einsum("oc,bcn->bon", wv, xf) + bv[None, :, None]
        logits = jnp.einsum("bci,bcj->bij", q, k)          # bmm(query^T, key)
        attn = jax.nn.softmax(logits, axis=-1)
        feat = jnp.einsum("bcj,bij->bci", v, attn)         # bmm(value, attn^T)
    return (gamma * feat + xf).reshape(B, C, H, W)


# ----------------------------------------------------------------------- driver
if __name__ == "__main__":
    key = jax.random.PRNGKey(0)
    ks = jax.random.split(key, 7)

    B, C, H, W = 2, 32, 16, 16               # in_channels=32 -> q/k channels = 4, HW=256
    Cq = C // 8

    x = jax.random.normal(ks[0], (B, C, H, W), jnp.float32)
    wq = jax.random.normal(ks[1], (Cq, C), jnp.float32) * 0.1   # 1x1 conv weights (out,in)
    bq = jax.random.normal(ks[2], (Cq,), jnp.float32) * 0.1
    wk = jax.random.normal(ks[3], (Cq, C), jnp.float32) * 0.1
    bk = jax.random.normal(ks[4], (Cq,), jnp.float32) * 0.1
    wv = jax.random.normal(ks[5], (C, C), jnp.float32) * 0.1
    bv = jax.random.normal(ks[6], (C,), jnp.float32) * 0.1
    # PyTorch initializes gamma to 0 (output == x); use a nonzero value so the
    # attention path is actually exercised by the check.
    gamma = jnp.float32(0.5)

    out = cross_attention_forward(x, wq, bq, wk, bk, wv, bv, gamma)
    out = jax.block_until_ready(out)
    assert out.shape == (B, C, H, W), out.shape

    ref = cross_attention_reference(x, wq, bq, wk, bk, wv, bv, gamma)
    max_err = float(jnp.max(jnp.abs(out - ref)))
    # tolerance covers bf16 MXU operands + approx reciprocal in the softmax
    assert jnp.allclose(out, ref, atol=1e-2, rtol=1e-2), max_err

    print("KERNEL_OK")
</pallas_src>

<mosaic_0001>
module attributes {stable_mosaic.version = 11 : i64} {
  func.func @_cross_attention_kernel(%arg0: i32, %arg1: i32, %arg2: memref<1x32x256xf32, #tpu.memory_space<vmem>>, %arg3: memref<56x32xbf16, #tpu.memory_space<vmem>>, %arg4: memref<56x1xf32, #tpu.memory_space<vmem>>, %arg5: memref<1x32x128xf32, #tpu.memory_space<vmem>>) attributes {dimension_semantics = [#tpu.dimension_semantics<parallel>, #tpu.dimension_semantics<parallel>], iteration_bounds = array<i64: 2, 2>, scalar_prefetch = 0 : i64, scratch_operands = 0 : i64, tpu.core_type = #tpu.core_type<tc>, window_params = [{transform_indices = @transform_0, window_bounds = array<i64: 1, 32, 256>}, {pipeline_mode = #tpu.pipeline_mode<synchronous>, transform_indices = @transform_1, window_bounds = array<i64: 56, 32>}, {pipeline_mode = #tpu.pipeline_mode<synchronous>, transform_indices = @transform_2, window_bounds = array<i64: 56, 1>}, {transform_indices = @transform_3, window_bounds = array<i64: 1, 32, 128>}]} {
    %c128_i32 = arith.constant 128 : i32
    %0 = arith.muli %arg1, %c128_i32 : i32
    %1 = tpu.assume_multiple %0, 128 : i32
    %c0 = arith.constant 0 : index
    %c0_0 = arith.constant 0 : index
    %c0_1 = arith.constant 0 : index
    %2 = vector.load %arg2[%c0, %c0_0, %c0_1] : memref<1x32x256xf32, #tpu.memory_space<vmem>>, vector<1x32x256xf32>
    %3 = vector.shape_cast %2 : vector<1x32x256xf32> to vector<32x256xf32>
    %c0_2 = arith.constant 0 : index
    %c0_3 = arith.constant 0 : index
    %4 = arith.index_cast %1 : i32 to index
    %5 = vector.load %arg2[%c0_2, %c0_3, %4] : memref<1x32x256xf32, #tpu.memory_space<vmem>>, vector<1x32x128xf32>
    %6 = vector.shape_cast %5 : vector<1x32x128xf32> to vector<32x128xf32>
    %c0_4 = arith.constant 0 : index
    %c0_5 = arith.constant 0 : index
    %7 = vector.load %arg3[%c0_4, %c0_5] : memref<56x32xbf16, #tpu.memory_space<vmem>>, vector<56x32xbf16>
    %c0_6 = arith.constant 0 : index
    %c0_7 = arith.constant 0 : index
    %8 = vector.load %arg4[%c0_6, %c0_7] : memref<56x1xf32, #tpu.memory_space<vmem>>, vector<56x1xf32>
    %9 = vector.extract_strided_slice %7 {offsets = [8, 0], sizes = [48, 32], strides = [1, 1]} : vector<56x32xbf16> to vector<48x32xbf16>
    %10 = arith.truncf %3 : vector<32x256xf32> to vector<32x256xbf16>
    %cst = arith.constant dense<0.000000e+00> : vector<48x256xf32>
    %11 = tpu.matmul %9, %10, %cst {dimension_numbers = #tpu.dot_dimension_numbers<[1], [0], [0], [1], [0, 0, 1, 1], [], []>} : vector<48x32xbf16>, vector<32x256xbf16>, vector<48x256xf32> -> vector<48x256xf32>
    %12 = vector.extract_strided_slice %8 {offsets = [8, 0], sizes = [48, 1], strides = [1, 1]} : vector<56x1xf32> to vector<48x1xf32>
    %13 = vector.broadcast %12 : vector<48x1xf32> to vector<48x256xf32>
    %14 = arith.addf %11, %13 : vector<48x256xf32>
    %15 = vector.extract_strided_slice %14 {offsets = [0, 0], sizes = [8, 256], strides = [1, 1]} : vector<48x256xf32> to vector<8x256xf32>
    %16 = vector.extract_strided_slice %14 {offsets = [8, 0], sizes = [40, 256], strides = [1, 1]} : vector<48x256xf32> to vector<40x256xf32>
    %17 = vector.extract_strided_slice %7 {offsets = [0, 0], sizes = [8, 32], strides = [1, 1]} : vector<56x32xbf16> to vector<8x32xbf16>
    %18 = arith.truncf %6 : vector<32x128xf32> to vector<32x128xbf16>
    %cst_8 = arith.constant dense<0.000000e+00> : vector<8x128xf32>
    %19 = tpu.matmul %17, %18, %cst_8 {dimension_numbers = #tpu.dot_dimension_numbers<[1], [0], [0], [1], [0, 0, 1, 1], [], []>} : vector<8x32xbf16>, vector<32x128xbf16>, vector<8x128xf32> -> vector<8x128xf32>
    %20 = vector.extract_strided_slice %8 {offsets = [0, 0], sizes = [8, 1], strides = [1, 1]} : vector<56x1xf32> to vector<8x1xf32>
    %21 = vector.broadcast %20 : vector<8x1xf32> to vector<8x128xf32>
    %22 = arith.addf %19, %21 : vector<8x128xf32>
    %cst_9 = arith.constant dense<0.000000e+00> : vector<128x256xf32>
    %23 = tpu.matmul %22, %15, %cst_9 {dimension_numbers = #tpu.dot_dimension_numbers<[0], [0], [1], [1], [0, 1, 1, 1], [], []>} : vector<8x128xf32>, vector<8x256xf32>, vector<128x256xf32> -> vector<128x256xf32>
    %cst_10 = arith.constant dense<0xFF800000> : vector<128xf32>
    %24 = vector.multi_reduction <maximumf>, %23, %cst_10 [1] : vector<128x256xf32> to vector<128xf32>
    %25 = vector.shape_cast %24 : vector<128xf32> to vector<128x1xf32>
    %26 = vector.broadcast %25 : vector<128x1xf32> to vector<128x256xf32>
    %27 = arith.subf %23, %26 : vector<128x256xf32>
    %28 = math.exp %27 : vector<128x256xf32>
    %29 = arith.truncf %16 : vector<40x256xf32> to vector<40x256xbf16>
    %30 = arith.truncf %28 : vector<128x256xf32> to vector<128x256xbf16>
    %cst_11 = arith.constant dense<0.000000e+00> : vector<40x128xf32>
    %31 = tpu.matmul %29, %30, %cst_11 {dimension_numbers = #tpu.dot_dimension_numbers<[1], [1], [0], [0], [0, 0, 1, 0], [], []>} : vector<40x256xbf16>, vector<128x256xbf16>, vector<40x128xf32> -> vector<40x128xf32>
    %32 = vector.extract_strided_slice %31 {offsets = [32, 0], sizes = [1, 128], strides = [1, 1]} : vector<40x128xf32> to vector<1x128xf32>
    %33 = tpu.reciprocal %32 {approx = true} : vector<1x128xf32> -> vector<1x128xf32>
    %34 = vector.extract_strided_slice %31 {offsets = [0, 0], sizes = [32, 128], strides = [1, 1]} : vector<40x128xf32> to vector<32x128xf32>
    %35 = vector.broadcast %33 : vector<1x128xf32> to vector<32x128xf32>
    %36 = arith.mulf %34, %35 : vector<32x128xf32>
    %37 = arith.addf %36, %6 : vector<32x128xf32>
    %c0_12 = arith.constant 0 : index
    %c0_13 = arith.constant 0 : index
    %c0_14 = arith.constant 0 : index
    %38 = vector.load %arg5[%c0_12, %c0_13, %c0_14] : memref<1x32x128xf32, #tpu.memory_space<vmem>>, vector<1x32x128xf32>
    %39 = vector.shape_cast %38 : vector<1x32x128xf32> to vector<32x128xf32>
    %40 = vector.shape_cast %37 : vector<32x128xf32> to vector<1x32x128xf32>
    tpu.vector_store %arg5[%c0_12, %c0_13, %c0_14], %40 {strides = array<i32>} : memref<1x32x128xf32, #tpu.memory_space<vmem>>, vector<1x32x128xf32>,
    return
  }
  func.func @transform_0(%arg0: i32, %arg1: i32) -> (i32, i32, i32) {
    %c0_i32 = arith.constant 0 : i32
    %c0_i32_0 = arith.constant 0 : i32
    %c0_i32_1 = arith.constant 0 : i32
    return %arg0, %c0_i32, %c0_i32_0 : i32, i32, i32
  }
  func.func @transform_1(%arg0: i32, %arg1: i32) -> (i32, i32) {
    %c0_i32 = arith.constant 0 : i32
    %c0_i32_0 = arith.constant 0 : i32
    %c0_i32_1 = arith.constant 0 : i32
    return %c0_i32, %c0_i32_0 : i32, i32
  }
  func.func @transform_2(%arg0: i32, %arg1: i32) -> (i32, i32) {
    %c0_i32 = arith.constant 0 : i32
    %c0_i32_0 = arith.constant 0 : i32
    %c0_i32_1 = arith.constant 0 : i32
    return %c0_i32, %c0_i32_0 : i32, i32
  }
  func.func @transform_3(%arg0: i32, %arg1: i32) -> (i32, i32, i32) {
    %c0_i32 = arith.constant 0 : i32
    %c0_i32_0 = arith.constant 0 : i32
    return %arg0, %c0_i32, %arg1 : i32, i32, i32
  }
}

</mosaic_0001>

<llo_original>
// kernel: tpu_custom_call.1
$region0: #{tpu_custom_call.1}
  #allocation0 [shape = 'u32[]', space=smem, size = 0x4, offset = 0x4, fixed_abs, tag = 'smem constant byte address 0x4 - core index']
  #allocation1 [shape = 'u32[72,128]{1,0:T(1,128)}', space=vmem, size = 0x9000, scoped, tag = 'internal scratch']
  %s0 = inlined_call_operand.hbm [shape: f32[2,32,256], index: 0, kind: input, shape index: {}]
  %s1 = inlined_call_operand.vmem [shape: bf16[56,32], index: 1, kind: input, shape index: {}]
  %s2 = inlined_call_operand.vmem [shape: f32[56,1], index: 2, kind: input, shape index: {}]
  %s3 = inlined_call_operand.hbm [shape: f32[2,32,256], index: 3, kind: output, shape index: {}]
  %s4 = sld [smem:[#allocation0]]
  $region49: #{tpu_custom_call.1} parent=0
    _
  %s6 = ssub.s32 1, %s4
  %s7 = scalar_select 0, %s6, %s4
  $region1: #{tpu_custom_call.1} parent=0
    #allocation2 [shape = 'u8[65536]{0}', space=vmem, size = 0x10000, scoped, tag = 'input window, operand 0']
    #allocation3 [shape = 's32[2]{0}', space=sflag, size = 0x8, scoped, tag = 'scoped memory for tpu_custom_call.1']
    #allocation4 [shape = 's32[2]{0}', space=sflag, size = 0x8, scoped, tag = 'scoped memory for tpu_custom_call.1']
    #allocation5 [shape = 'u8[32768]{0}', space=vmem, size = 0x8000, scoped, tag = 'output window, operand 0']
    %8 = vsyncpa [#allocation3], 0
    %s9 = scalar_lea.sflag [#allocation3], 1
    %10 = vsyncpa %s9, 0
    %11 = vsyncpa [#allocation4], 0
    %s12 = scalar_lea.sflag [#allocation4], 1
    %13 = vsyncpa %s12, 0
    loop: start=0, step=1, limit=6
    $region2: #{tpu_custom_call.1} parent=1 // loop_pre_header
      _
    $region3: #{tpu_custom_call.1} parent=1 // loop_header
      %s15 = sphi 0, %s19
      %p16 = scmp.ge.s32.totalorder %s15, 6
      %s22 = sphi 0, %s34
      %s23 = sphi 0, %s30
      %s24 = sphi 0, %s22
      %s25 = sphi 0, %s23
      %s26 = sphi 0, %s24
      %s27 = sphi 0, %s25
      %s37 = sphi 0, %s39
      %s40 = sphi 0, %s37
      %s41 = sphi 0, %s40
      %s57 = sphi 0, %s41
      %s61 = sphi 0, %s61
      %s63 = sphi 0, %s61
      %s64 = sphi 0, %s63
      %s78 = sphi 0, %s64
      %s82 = sphi 0, %s82
      %s84 = sphi 0, %s82
      %s85 = sphi 0, %s84
      %s99 = sphi 0, %s85
      %s107 = sphi 0, %s109
      %s110 = sphi 0, %s107
      %s111 = sphi 0, %s110
      %s127 = sphi 0, %s111
    $region4: #{tpu_custom_call.1} parent=1 // loop_header_branch
      %18 = sbr.rel (%p16) target = $region8
    $region5: #{tpu_custom_call.1} parent=1 // loop_body
      %s20 = ssub.s32 %s15, 1
      %s21 = ssub.s32 %s15, 2
      %s28 = sadd.s32 1, %s23
      %p29 = scmp.ge.s32.totalorder %s28, 2
      %s30 = scalar_select %p29, 0, %s28
      %s31 = sadd.s32 1, %s22
      %s32 = scalar_select %p29, %s31, %s22
      %p33 = scmp.ge.s32.totalorder %s32, 2
      %s34 = scalar_select %p33, 0, %s32
      %s35 = ssub.s32 %s22, %s34
      %p36 = scmp.eq.s32.totalorder %s35, 0
      %s38 = sadd.s32 %s37, 1
      %s39 = scalar_select %p36, %s37, %s38
      %p42 = pneg %p36
      %p43 = scmp.eq.s32.totalorder %s15, 3
      %p44 = por %p42, %p43
      %p45 = scmp.ne.s32.totalorder %s37, %s40
      %p46 = scmp.eq.s32.totalorder %s15, 0
      %p47 = por %p45, %p46
      %p48 = scmp.ne.s32.totalorder %s37, %s40
      %p49 = scmp.eq.s32.totalorder %s20, 3
      %p50 = por %p48, %p49
      %p51 = scmp.ne.s32.totalorder %s40, %s41
      %p52 = scmp.eq.s32.totalorder %s20, 0
      %p53 = por %p51, %p52
      %p54 = scmp.ne.s32.totalorder %s40, %s41
      %p55 = scmp.eq.s32.totalorder %s21, 3
      %p56 = por %p54, %p55
      %p58 = scmp.ne.s32.totalorder %s41, %s57
      %p59 = scmp.eq.s32.totalorder %s21, 0
      %p60 = por %p58, %p59
      %s62 = sadd.s32 %s61, 1
      %p65 = scmp.eq.s32.totalorder %s15, 3
      %p66 = scmp.ne.s32.totalorder %s61, %s63
      %p67 = scmp.eq.s32.totalorder %s15, 0
      %p68 = por %p66, %p67
      %p69 = scmp.ne.s32.totalorder %s61, %s63
      %p70 = scmp.eq.s32.totalorder %s20, 3
      %p71 = por %p69, %p70
      %p72 = scmp.ne.s32.totalorder %s63, %s64
      %p73 = scmp.eq.s32.totalorder %s20, 0
      %p74 = por %p72, %p73
      %p75 = scmp.ne.s32.totalorder %s63, %s64
      %p76 = scmp.eq.s32.totalorder %s21, 3
      %p77 = por %p75, %p76
      %p79 = scmp.ne.s32.totalorder %s64, %s78
      %p80 = scmp.eq.s32.totalorder %s21, 0
      %p81 = por %p79, %p80
      %s83 = sadd.s32 %s82, 1
      %p86 = scmp.eq.s32.totalorder %s15, 3
      %p87 = scmp.ne.s32.totalorder %s82, %s84
      %p88 = scmp.eq.s32.totalorder %s15, 0
      %p89 = por %p87, %p88
      %p90 = scmp.ne.s32.totalorder %s82, %s84
      %p91 = scmp.eq.s32.totalorder %s20, 3
      %p92 = por %p90, %p91
      %p93 = scmp.ne.s32.totalorder %s84, %s85
      %p94 = scmp.eq.s32.totalorder %s20, 0
      %p95 = por %p93, %p94
      %p96 = scmp.ne.s32.totalorder %s84, %s85
      %p97 = scmp.eq.s32.totalorder %s21, 3
      %p98 = por %p96, %p97
      %p100 = scmp.ne.s32.totalorder %s85, %s99
      %p101 = scmp.eq.s32.totalorder %s21, 0
      %p102 = por %p100, %p101
      %s103 = ssub.s32 %s22, %s34
      %s104 = ssub.s32 %s23, %s30
      %s105 = sor.u32 %s103, %s104
      %p106 = scmp.eq.s32.totalorder %s105, 0
      %s108 = sadd.s32 %s107, 1
      %s109 = scalar_select %p106, %s107, %s108
      %p112 = pneg %p106
      %p113 = scmp.eq.s32.totalorder %s15, 3
      %p114 = por %p112, %p113
      %p115 = scmp.ne.s32.totalorder %s107, %s110
      %p116 = scmp.eq.s32.totalorder %s15, 0
      %p117 = por %p115, %p116
      %p118 = scmp.ne.s32.totalorder %s107, %s110
      %p119 = scmp.eq.s32.totalorder %s20, 3
      %p120 = por %p118, %p119
      %p121 = scmp.ne.s32.totalorder %s110, %s111
      %p122 = scmp.eq.s32.totalorder %s20, 0
      %p123 = por %p121, %p122
      %p124 = scmp.ne.s32.totalorder %s110, %s111
      %p125 = scmp.eq.s32.totalorder %s21, 3
      %p126 = por %p124, %p125
      %p128 = scmp.ne.s32.totalorder %s111, %s127
      %p129 = scmp.eq.s32.totalorder %s21, 0
      %p130 = por %p128, %p129
      %p131 = scmp.le.s32.totalorder 1, %s15
      %p132 = scmp.lt.s32.totalorder %s15, 5
      %p133 = pnand %p131, %p132
      %p134 = pneg %p133
      // Predicated region
      $region9: #{tpu_custom_call.1} parent=5 // pred_check
        _
      $region10: #{tpu_custom_call.1} parent=5 // pred_check_branch
        %136 = sbr.rel (%p133) target = $region12
      $region11: #{tpu_custom_call.1} parent=5 // pred_region
        %s137 = ssub.s32 %s15, 1
        // Predicated region
        $region13: #{tpu_custom_call.1} parent=11 // pred_check
          %p138 = pneg %p74
        $region14: #{tpu_custom_call.1} parent=11 // pred_check_branch
          %140 = sbr.rel (%p138) target = $region16
        $region15: #{tpu_custom_call.1} parent=11 // pred_region
          _
        $region16: #{tpu_custom_call.1} parent=11 // pred_fallthru
          _
        // Predicated region
        $region17: #{tpu_custom_call.1} parent=11 // pred_check
          %p141 = pneg %p95
        $region18: #{tpu_custom_call.1} parent=11 // pred_check_branch
          %143 = sbr.rel (%p141) target = $region20
        $region19: #{tpu_custom_call.1} parent=11 // pred_region
          _
        $region20: #{tpu_custom_call.1} parent=11 // pred_fallthru
          _
      $region12: #{tpu_custom_call.1} parent=5 // pred_fallthru
        _
      %p144 = scmp.lt.s32.totalorder %s15, 4
      // Predicated region
      $region21: #{tpu_custom_call.1} parent=5 // pred_check
        %p145 = pneg %p144
      $region22: #{tpu_custom_call.1} parent=5 // pred_check_branch
        %147 = sbr.rel (%p145) target = $region24
      $region23: #{tpu_custom_call.1} parent=5 // pred_region
        // Predicated region
        $region25: #{tpu_custom_call.1} parent=23 // pred_check
          %p148 = pneg %p47
        $region26: #{tpu_custom_call.1} parent=23 // pred_check_branch
          %150 = sbr.rel (%p148) target = $region28
        $region27: #{tpu_custom_call.1} parent=23 // pred_region
          %s151 = sand.u32 %s37, 1
          %s152 = scalar_lea.sflag [#allocation3], %s151
          %s153 = sand.u32 %s37, 1
          %s154 = smul.addr %s153, 64
          %s155 = scalar_lea.vmem [#allocation2], %s154
          %157 = vsyncadd %s152, 0
          %s158 = smul.addr %s22, 8
          %s159 = smul.addr %s158, 8
          %s160 = scalar_lea.hbm %s0, %s159
          %s161 = sshll.u32 %s160, 4
          %s162 = int_to_ptr.hbm [resolvable:$true] %s161
          %s163 = sshll.u32 %s155, 4
          %s164 = int_to_ptr.vmem [resolvable:$true] %s163
          %169 = dma.hbm_to_vmem [thread:$0]  %s162, 1024, %s164, %s152, 256, 256, 16
        $region28: #{tpu_custom_call.1} parent=23 // pred_fallthru
          _
      $region24: #{tpu_custom_call.1} parent=5 // pred_fallthru
        _
      %p170 = scmp.le.s32.totalorder 1, %s15
      %p171 = scmp.lt.s32.totalorder %s15, 5
      %p172 = pnand %p170, %p171
      %p173 = pneg %p172
      // Predicated region
      $region29: #{tpu_custom_call.1} parent=5 // pred_check
        _
      $region30: #{tpu_custom_call.1} parent=5 // pred_check_branch
        %175 = sbr.rel (%p172) target = $region32
      $region31: #{tpu_custom_call.1} parent=5 // pred_region
        %s176 = ssub.s32 %s15, 1
        %s177 = sand.u32 %s40, 1
        %s178 = scalar_lea.sflag [#allocation3], %s177
        %s179 = sand.u32 %s40, 1
        %s180 = smul.addr %s179, 64
        %s181 = scalar_lea.vmem [#allocation2], %s180
        // Predicated region
        $region33: #{tpu_custom_call.1} parent=31 // pred_check
          %p182 = pneg %p53
        $region34: #{tpu_custom_call.1} parent=31 // pred_check_branch
          %184 = sbr.rel (%p182) target = $region36
        $region35: #{tpu_custom_call.1} parent=31 // pred_region
          %186 = dma.done %s178, 1024
        $region36: #{tpu_custom_call.1} parent=31 // pred_fallthru
          _
        %s187 = sand.u32 %s40, 1
        %s188 = scalar_lea.sflag [#allocation3], %s187
        %s189 = sand.u32 %s40, 1
        %s190 = smul.addr %s189, 64
        %s191 = scalar_lea.vmem [#allocation2], %s190
        %p192 = pneg %p53
        %p193 = pneg %p50
        %p194 = pneg %p74
        %p195 = pneg %p71
        %p196 = pneg %p95
        %p197 = pneg %p92
        %p198 = pneg %p123
        %p199 = pneg %p120
        %s200 = sand.u32 %s110, 1
        %s201 = scalar_lea.sflag [#allocation4], %s200
        %s202 = sand.u32 %s110, 1
        %s203 = smul.addr %s202, 32
        %s204 = scalar_lea.vmem [#allocation5], %s203
        %s206 = smul.u32 %s25, 128
        %v207 = vld [vmem:[%s181] sm:$0xff]
        %v208 = vld [vmem:[%s181 + $0x8] sm:$0xff]
        %v209 = vld [vmem:[%s181 + $0x10] sm:$0xff]
        %v210 = vld [vmem:[%s181 + $0x18] sm:$0xff]
        %v211 = vld [vmem:[%s181 + $0x20] sm:$0xff]
        %v212 = vld [vmem:[%s181 + $0x28] sm:$0xff]
        %v213 = vld [vmem:[%s181 + $0x30] sm:$0xff]
        %v214 = vld [vmem:[%s181 + $0x38] sm:$0xff]
        %s215 = sshra.s32 %s206, 7
        %s216 = sand.u32 %s206, 127
        %s217 = smul.addr %s215, 8
        %s218 = scalar_lea.vmem %s181, %s217 [#allocation2]
        %v219 = vld [vmem:[%s218] sm:$0xff]
        %v220 = vld [vmem:[%s218 + $0x10] sm:$0xff]
        %v221 = vld [vmem:[%s218 + $0x20] sm:$0xff]
        %v222 = vld [vmem:[%s218 + $0x30] sm:$0xff]
        %v223 = vld [vmem:[%s1] sm:$0xf]
        %v224 = vld [vmem:[%s1 + $0x4] sm:$0xf]
        %v225 = vld [vmem:[%s1 + $0x8] sm:$0xf]
        %v226 = vld [vmem:[%s1 + $0xc] sm:$0xf]
        %v227 = vld [vmem:[%s1 + $0x10] sm:$0xf]
        %v228 = vld [vmem:[%s1 + $0x14] sm:$0xf]
        %v229 = vld [vmem:[%s1 + $0x18] sm:$0xf]
        %v230 = vld [vmem:[%s2] sm:$0xff]
        %v231 = vld [vmem:[%s2 + $0x8] sm:$0xff]
        %v232 = vld [vmem:[%s2 + $0x10] sm:$0xff]
        %v233 = vld [vmem:[%s2 + $0x18] sm:$0xff]
        %v234 = vld [vmem:[%s2 + $0x20] sm:$0xff]
        %v235 = vld [vmem:[%s2 + $0x28] sm:$0xff]
        %v236 = vld [vmem:[%s2 + $0x30] sm:$0xff]
        %v237 = vpack.c.bf16 %v209, %v207
        %v238 = vpack.c.bf16 %v210, %v208
        %v239 = vpack.c.bf16 %v213, %v211
        %v240 = vpack.c.bf16 %v214, %v212
        %242 = vset.pattern.permute.xlu0 0
        %243 = vperm.xlu0 %242, %v231
        %v244 = vpop.permute.xlu0 %243
        %247 = vset.pattern.permute.xlu0 0
        %248 = vperm.xlu0 %247, %v232
        %v249 = vpop.permute.xlu0 %248
        %252 = vset.pattern.permute.xlu0 0
        %253 = vperm.xlu0 %252, %v233
        %v254 = vpop.permute.xlu0 %253
        %257 = vset.pattern.permute.xlu0 0
        %258 = vperm.xlu0 %257, %v234
        %v259 = vpop.permute.xlu0 %258
        %262 = vset.pattern.permute.xlu0 0
        %263 = vperm.xlu0 %262, %v235
        %v264 = vpop.permute.xlu0 %263
        %267 = vset.pattern.permute.xlu0 0
        %268 = vperm.xlu0 %267, %v236
        %v269 = vpop.permute.xlu0 %268
        %v277 = vunpack.c.l.b16 %v224
        %v278 = vunpack.c.l.b16 %v225
        %v279 = vunpack.c.l.b16 %v226
        %v280 = vunpack.c.l.b16 %v227
        %v281 = vunpack.c.l.b16 %v228
        %v282 = vunpack.c.l.b16 %v229
        %v283 = vpack.c.b16 %v278, %v277
        %v284 = vpack.c.b16 %v280, %v279
        %v285 = vpack.c.b16 %v282, %v281
        %vm286 = vcmask 261120
        %v288 = vsel %vm286, %v283, 0
        %v291 = vsel %vm286, %v284, 0
        %v294 = vsel %vm286, %v285, 0
        %296 = vmatpush.bf16.msra.mxu0 0
        %297 = vmatpush.bf16.msra.mxu0 0
        %298 = vmatpush.bf16.msra.mxu0 0
        %299 = vmatpush.bf16.msra.mxu0 0
        %300 = vmatpush.bf16.msra.mxu0 0
        %301 = vmatpush.bf16.msra.mxu0 0
        %302 = vmatpush.bf16.msra.mxu0 %v239
        %303 = vmatpush.bf16.msra.mxu0 %v237
        %304 = vmatmul.bf16.gmra.mxu0 %v288
        %v305 = vpop.f32.mrf.mxu0
        %v306 = vadd.f32 %v244, %v305
        %v307 = vpop.f32.mrf.mxu0
        %v308 = vadd.f32 %v249, %v307
        %309 = vmatmul.bf16.gmra.mxu0 %v291
        %v310 = vpop.f32.mrf.mxu0
        %v311 = vadd.f32 %v254, %v310
        %v312 = vpop.f32.mrf.mxu0
        %v313 = vadd.f32 %v259, %v312
        %314 = vmatmul.bf16.gmra.mxu0 %v294
        %v315 = vpop.f32.mrf.mxu0
        %v316 = vadd.f32 %v264, %v315
        %v317 = vpop.f32.mrf.mxu0
        %v318 = vadd.f32 %v269, %v317
        %319 = vdwg.mxu0
        %320 = vmatpush.bf16.msra.mxu0 0
        %321 = vmatpush.bf16.msra.mxu0 0
        %322 = vmatpush.bf16.msra.mxu0 0
        %323 = vmatpush.bf16.msra.mxu0 0
        %324 = vmatpush.bf16.msra.mxu0 0
        %325 = vmatpush.bf16.msra.mxu0 0
        %326 = vmatpush.bf16.msra.mxu0 %v240
        %327 = vmatpush.bf16.msra.mxu0 %v238
        %328 = vmatmul.bf16.gmra.mxu0 %v288
        %v329 = vpop.f32.mrf.mxu0
        %v330 = vadd.f32 %v244, %v329
        %v331 = vpop.f32.mrf.mxu0
        %v332 = vadd.f32 %v249, %v331
        %333 = vmatmul.bf16.gmra.mxu0 %v291
        %v334 = vpop.f32.mrf.mxu0
        %v335 = vadd.f32 %v254, %v334
        %v336 = vpop.f32.mrf.mxu0
        %v337 = vadd.f32 %v259, %v336
        %338 = vmatmul.bf16.gmra.mxu0 %v294
        %v339 = vpop.f32.mrf.mxu0
        %v340 = vadd.f32 %v264, %v339
        %v341 = vpop.f32.mrf.mxu0
        %v342 = vadd.f32 %v269, %v341
        %343 = vdwg.mxu0
        %v344 = vpack.c.bf16 %v220, %v219
        %v345 = vpack.c.bf16 %v222, %v221
        %347 = vset.pattern.permute.xlu0 0
        %348 = vperm.xlu0 %347, %v230
        %v349 = vpop.permute.xlu0 %348
        %v352 = vsel %vm286, %v223, 0
        %354 = vmatpush.bf16.msra.mxu0 0
        %355 = vmatpush.bf16.msra.mxu0 0
        %356 = vmatpush.bf16.msra.mxu0 0
        %357 = vmatpush.bf16.msra.mxu0 0
        %358 = vmatpush.bf16.msra.mxu0 0
        %359 = vmatpush.bf16.msra.mxu0 0
        %360 = vmatpush.bf16.msra.mxu0 %v345
        %361 = vmatpush.bf16.msra.mxu0 %v344
        %362 = vmatmul.bf16.gmra.mxu0 %v352
        %v363 = vpop.f32.mrf.mxu0
        %v364 = vadd.f32 %v349, %v363
        %v365 = vpop.f32.mrf.mxu0
        %366 = vdwg.mxu0
        %367 = vxpose.xlu0.b32.start [1/16] %v364, 128
        %368 = vxpose.xlu0.b32.cont [2/16] 0.0, 128
        %369 = vxpose.xlu0.b32.cont [3/16] 0.0, 128
        %370 = vxpose.xlu0.b32.cont [4/16] 0.0, 128
        %371 = vxpose.xlu0.b32.cont [5/16] 0.0, 128
        %372 = vxpose.xlu0.b32.cont [6/16] 0.0, 128
        %373 = vxpose.xlu0.b32.cont [7/16] 0.0, 128
        %374 = vxpose.xlu0.b32.cont [8/16] 0.0, 128
        %375 = vxpose.xlu0.b32.cont [9/16] 0.0, 128
        %376 = vxpose.xlu0.b32.cont [10/16] 0.0, 128
        %377 = vxpose.xlu0.b32.cont [11/16] 0.0, 128
        %378 = vxpose.xlu0.b32.cont [12/16] 0.0, 128
        %379 = vxpose.xlu0.b32.cont [13/16] 0.0, 128
        %380 = vxpose.xlu0.b32.cont [14/16] 0.0, 128
        %381 = vxpose.xlu0.b32.cont [15/16] 0.0, 128
        %382 = vxpose.xlu0.b32.end [16/16] 0.0, 128
        %v383 = vpop.trf.xlu0
        %v384 = vpop.trf.xlu0
        %v385 = vpop.trf.xlu0
        %v386 = vpop.trf.xlu0
        %v387 = vpop.trf.xlu0
        %v388 = vpop.trf.xlu0
        %v389 = vpop.trf.xlu0
        %v390 = vpop.trf.xlu0
        %v391 = vpop.trf.xlu0
        %v392 = vpop.trf.xlu0
        %v393 = vpop.trf.xlu0
        %v394 = vpop.trf.xlu0
        %v395 = vpop.trf.xlu0
        %v396 = vpop.trf.xlu0
        %v397 = vpop.trf.xlu0
        %v398 = vpop.trf.xlu0
        %vm399 = vcmask 64512
        %v401 = vsel %vm399, %v383, 0
        %v404 = vsel %vm399, %v384, 0
        %v407 = vsel %vm399, %v385, 0
        %v410 = vsel %vm399, %v386, 0
        %v413 = vsel %vm399, %v387, 0
        %v416 = vsel %vm399, %v388, 0
        %v419 = vsel %vm399, %v389, 0
        %v422 = vsel %vm399, %v390, 0
        %v425 = vsel %vm399, %v391, 0
        %v428 = vsel %vm399, %v392, 0
        %v431 = vsel %vm399, %v393, 0
        %v434 = vsel %vm399, %v394, 0
        %v437 = vsel %vm399, %v395, 0
        %v440 = vsel %vm399, %v396, 0
        %v443 = vsel %vm399, %v397, 0
        %v446 = vsel %vm399, %v398, 0
        %448 = vmatpush.msra.mxu0 0.0
        %449 = vmatpush.msra.mxu0 0.0
        %450 = vmatpush.msra.mxu0 0.0
        %451 = vmatpush.msra.mxu0 0.0
        %452 = vmatpush.msra.mxu0 0.0
        %453 = vmatpush.msra.mxu0 0.0
        %454 = vmatpush.msra.mxu0 0.0
        %455 = vmatpush.msra.mxu0 0.0
        %456 = vmatpush.msra.mxu0 0.0
        %457 = vmatpush.msra.mxu0 0.0
        %458 = vmatpush.msra.mxu0 0.0
        %459 = vmatpush.msra.mxu0 0.0
        %460 = vmatpush.msra.mxu0 0.0
        %461 = vmatpush.msra.mxu0 0.0
        %462 = vmatpush.msra.mxu0 0.0
        %463 = vmatpush.msra.mxu0 %v306
        %464 = vmatmul.f32.gmra.mxu0 %v401
        %v465 = vpop.f32.mrf.mxu0
        %v466 = vadd.f32 0.0, %v465
        %467 = vmatmul.f32.gmra.mxu0 %v404
        %v468 = vpop.f32.mrf.mxu0
        %v469 = vadd.f32 0.0, %v468
        %470 = vmatmul.f32.gmra.mxu0 %v407
        %v471 = vpop.f32.mrf.mxu0
        %v472 = vadd.f32 0.0, %v471
        %473 = vmatmul.f32.gmra.mxu0 %v410
        %v474 = vpop.f32.mrf.mxu0
        %v475 = vadd.f32 0.0, %v474
        %476 = vmatmul.f32.gmra.mxu0 %v413
        %v477 = vpop.f32.mrf.mxu0
        %v478 = vadd.f32 0.0, %v477
        %479 = vmatmul.f32.gmra.mxu0 %v416
        %v480 = vpop.f32.mrf.mxu0
        %v481 = vadd.f32 0.0, %v480
        %482 = vmatmul.f32.gmra.mxu0 %v419
        %v483 = vpop.f32.mrf.mxu0
        %v484 = vadd.f32 0.0, %v483
        %485 = vmatmul.f32.gmra.mxu0 %v422
        %v486 = vpop.f32.mrf.mxu0
        %v487 = vadd.f32 0.0, %v486
        %488 = vmatmul.f32.gmra.mxu0 %v425
        %v489 = vpop.f32.mrf.mxu0
        %v490 = vadd.f32 0.0, %v489
        %491 = vmatmul.f32.gmra.mxu0 %v428
        %v492 = vpop.f32.mrf.mxu0
        %v493 = vadd.f32 0.0, %v492
        %494 = vmatmul.f32.gmra.mxu0 %v431
        %v495 = vpop.f32.mrf.mxu0
        %v496 = vadd.f32 0.0, %v495
        %497 = vmatmul.f32.gmra.mxu0 %v434
        %v498 = vpop.f32.mrf.mxu0
        %v499 = vadd.f32 0.0, %v498
        %500 = vmatmul.f32.gmra.mxu0 %v437
        %v501 = vpop.f32.mrf.mxu0
        %v502 = vadd.f32 0.0, %v501
        %503 = vmatmul.f32.gmra.mxu0 %v440
        %v504 = vpop.f32.mrf.mxu0
        %v505 = vadd.f32 0.0, %v504
        %506 = vmatmul.f32.gmra.mxu0 %v443
        %v507 = vpop.f32.mrf.mxu0
        %v508 = vadd.f32 0.0, %v507
        %509 = vmatmul.f32.gmra.mxu0 %v446
        %v510 = vpop.f32.mrf.mxu0
        %v511 = vadd.f32 0.0, %v510
        %512 = vdwg.mxu0
        %513 = vmatpush.msra.mxu0 0.0
        %514 = vmatpush.msra.mxu0 0.0
        %515 = vmatpush.msra.mxu0 0.0
        %516 = vmatpush.msra.mxu0 0.0
        %517 = vmatpush.msra.mxu0 0.0
        %518 = vmatpush.msra.mxu0 0.0
        %519 = vmatpush.msra.mxu0 0.0
        %520 = vmatpush.msra.mxu0 0.0
        %521 = vmatpush.msra.mxu0 0.0
        %522 = vmatpush.msra.mxu0 0.0
        %523 = vmatpush.msra.mxu0 0.0
        %524 = vmatpush.msra.mxu0 0.0
        %525 = vmatpush.msra.mxu0 0.0
        %526 = vmatpush.msra.mxu0 0.0
        %527 = vmatpush.msra.mxu0 0.0
        %528 = vmatpush.msra.mxu0 %v330
        %529 = vmatmul.f32.gmra.mxu0 %v401
        %v530 = vpop.f32.mrf.mxu0
        %v531 = vadd.f32 0.0, %v530
        %532 = vmatmul.f32.gmra.mxu0 %v404
        %v533 = vpop.f32.mrf.mxu0
        %v534 = vadd.f32 0.0, %v533
        %535 = vmatmul.f32.gmra.mxu0 %v407
        %v536 = vpop.f32.mrf.mxu0
        %v537 = vadd.f32 0.0, %v536
        %538 = vmatmul.f32.gmra.mxu0 %v410
        %v539 = vpop.f32.mrf.mxu0
        %v540 = vadd.f32 0.0, %v539
        %541 = vmatmul.f32.gmra.mxu0 %v413
        %v542 = vpop.f32.mrf.mxu0
        %v543 = vadd.f32 0.0, %v542
        %544 = vmatmul.f32.gmra.mxu0 %v416
        %v545 = vpop.f32.mrf.mxu0
        %v546 = vadd.f32 0.0, %v545
        %547 = vmatmul.f32.gmra.mxu0 %v419
        %v548 = vpop.f32.mrf.mxu0
        %v549 = vadd.f32 0.0, %v548
        %550 = vmatmul.f32.gmra.mxu0 %v422
        %v551 = vpop.f32.mrf.mxu0
        %v552 = vadd.f32 0.0, %v551
        %553 = vmatmul.f32.gmra.mxu0 %v425
        %v554 = vpop.f32.mrf.mxu0
        %v555 = vadd.f32 0.0, %v554
        %556 = vmatmul.f32.gmra.mxu0 %v428
        %v557 = vpop.f32.mrf.mxu0
        %v558 = vadd.f32 0.0, %v557
        %559 = vmatmul.f32.gmra.mxu0 %v431
        %v560 = vpop.f32.mrf.mxu0
        %v561 = vadd.f32 0.0, %v560
        %562 = vmatmul.f32.gmra.mxu0 %v434
        %v563 = vpop.f32.mrf.mxu0
        %v564 = vadd.f32 0.0, %v563
        %565 = vmatmul.f32.gmra.mxu0 %v437
        %v566 = vpop.f32.mrf.mxu0
        %v567 = vadd.f32 0.0, %v566
        %568 = vmatmul.f32.gmra.mxu0 %v440
        %v569 = vpop.f32.mrf.mxu0
        %v570 = vadd.f32 0.0, %v569
        %571 = vmatmul.f32.gmra.mxu0 %v443
        %v572 = vpop.f32.mrf.mxu0
        %v573 = vadd.f32 0.0, %v572
        %574 = vmatmul.f32.gmra.mxu0 %v446
        %v575 = vpop.f32.mrf.mxu0
        %v576 = vadd.f32 0.0, %v575
        %577 = vdwg.mxu0
        %v578 = vmax.f32 %v466, %v531
        %579 = vmax.xlane.f32.xlu0 %v578
        %v580 = vpop.xlane.xlu0 %579
        %v581 = vmax.f32 %v469, %v534
        %582 = vmax.xlane.f32.xlu0 %v581
        %v583 = vpop.xlane.xlu0 %582
        %v584 = vmax.f32 %v472, %v537
        %585 = vmax.xlane.f32.xlu0 %v584
        %v586 = vpop.xlane.xlu0 %585
        %v587 = vmax.f32 %v475, %v540
        %588 = vmax.xlane.f32.xlu0 %v587
        %v589 = vpop.xlane.xlu0 %588
        %v590 = vmax.f32 %v478, %v543
        %591 = vmax.xlane.f32.xlu0 %v590
        %v592 = vpop.xlane.xlu0 %591
        %v593 = vmax.f32 %v481, %v546
        %594 = vmax.xlane.f32.xlu0 %v593
        %v595 = vpop.xlane.xlu0 %594
        %v596 = vmax.f32 %v484, %v549
        %597 = vmax.xlane.f32.xlu0 %v596
        %v598 = vpop.xlane.xlu0 %597
        %v599 = vmax.f32 %v487, %v552
        %600 = vmax.xlane.f32.xlu0 %v599
        %v601 = vpop.xlane.xlu0 %600
        %v602 = vmax.f32 %v490, %v555
        %603 = vmax.xlane.f32.xlu0 %v602
        %v604 = vpop.xlane.xlu0 %603
        %v605 = vmax.f32 %v493, %v558
        %606 = vmax.xlane.f32.xlu0 %v605
        %v607 = vpop.xlane.xlu0 %606
        %v608 = vmax.f32 %v496, %v561
        %609 = vmax.xlane.f32.xlu0 %v608
        %v610 = vpop.xlane.xlu0 %609
        %v611 = vmax.f32 %v499, %v564
        %612 = vmax.xlane.f32.xlu0 %v611
        %v613 = vpop.xlane.xlu0 %612
        %v614 = vmax.f32 %v502, %v567
        %615 = vmax.xlane.f32.xlu0 %v614
        %v616 = vpop.xlane.xlu0 %615
        %v617 = vmax.f32 %v505, %v570
        %618 = vmax.xlane.f32.xlu0 %v617
        %v619 = vpop.xlane.xlu0 %618
        %v620 = vmax.f32 %v508, %v573
        %621 = vmax.xlane.f32.xlu0 %v620
        %v622 = vpop.xlane.xlu0 %621
        %v623 = vmax.f32 %v511, %v576
        %624 = vmax.xlane.f32.xlu0 %v623
        %v625 = vpop.xlane.xlu0 %624
        %v626 = vsub.f32 %v466, %v580
        %v627 = vsub.f32 %v531, %v580
        %v628 = vsub.f32 %v469, %v583
        %v629 = vsub.f32 %v534, %v583
        %v630 = vsub.f32 %v472, %v586
        %v631 = vsub.f32 %v537, %v586
        %v632 = vsub.f32 %v475, %v589
        %v633 = vsub.f32 %v540, %v589
        %v634 = vsub.f32 %v478, %v592
        %v635 = vsub.f32 %v543, %v592
        %v636 = vsub.f32 %v481, %v595
        %v637 = vsub.f32 %v546, %v595
        %v638 = vsub.f32 %v484, %v598
        %v639 = vsub.f32 %v549, %v598
        %v640 = vsub.f32 %v487, %v601
        %v641 = vsub.f32 %v552, %v601
        %v642 = vsub.f32 %v490, %v604
        %v643 = vsub.f32 %v555, %v604
        %v644 = vsub.f32 %v493, %v607
        %v645 = vsub.f32 %v558, %v607
        %v646 = vsub.f32 %v496, %v610
        %v647 = vsub.f32 %v561, %v610
        %v648 = vsub.f32 %v499, %v613
        %v649 = vsub.f32 %v564, %v613
        %v650 = vsub.f32 %v502, %v616
        %v651 = vsub.f32 %v567, %v616
        %v652 = vsub.f32 %v505, %v619
        %v653 = vsub.f32 %v570, %v619
        %v654 = vsub.f32 %v508, %v622
        %v655 = vsub.f32 %v573, %v622
        %v656 = vsub.f32 %v511, %v625
        %v657 = vsub.f32 %v576, %v625
        %v658 = vmul.f32 %v626, 1.442695
        %v659 = vpow.pop %v658
        %v660 = vmul.f32 %v627, 1.442695
        %v661 = vpow.pop %v660
        %v662 = vmul.f32 %v628, 1.442695
        %v663 = vpow.pop %v662
        %v664 = vmul.f32 %v629, 1.442695
        %v665 = vpow.pop %v664
        %v666 = vmul.f32 %v630, 1.442695
        %v667 = vpow.pop %v666
        %v668 = vmul.f32 %v631, 1.442695
        %v669 = vpow.pop %v668
        %v670 = vmul.f32 %v632, 1.442695
        %v671 = vpow.pop %v670
        %v672 = vmul.f32 %v633, 1.442695
        %v673 = vpow.pop %v672
        %v674 = vmul.f32 %v634, 1.442695
        %v675 = vpow.pop %v674
        %v676 = vmul.f32 %v635, 1.442695
        %v677 = vpow.pop %v676
        %v678 = vmul.f32 %v636, 1.442695
        %v679 = vpow.pop %v678
        %v680 = vmul.f32 %v637, 1.442695
        %v681 = vpow.pop %v680
        %v682 = vmul.f32 %v638, 1.442695
        %v683 = vpow.pop %v682
        %v684 = vmul.f32 %v639, 1.442695
        %v685 = vpow.pop %v684
        %v686 = vmul.f32 %v640, 1.442695
        %v687 = vpow.pop %v686
        %v688 = vmul.f32 %v641, 1.442695
        %v689 = vpow.pop %v688
        %v690 = vmul.f32 %v642, 1.442695
        %v691 = vpow.pop %v690
        %v692 = vmul.f32 %v643, 1.442695
        %v693 = vpow.pop %v692
        %v694 = vmul.f32 %v644, 1.442695
        %v695 = vpow.pop %v694
        %v696 = vmul.f32 %v645, 1.442695
        %v697 = vpow.pop %v696
        %v698 = vmul.f32 %v646, 1.442695
        %v699 = vpow.pop %v698
        %v700 = vmul.f32 %v647, 1.442695
        %v701 = vpow.pop %v700
        %v702 = vmul.f32 %v648, 1.442695
        %v703 = vpow.pop %v702
        %v704 = vmul.f32 %v649, 1.442695
        %v705 = vpow.pop %v704
        %v706 = vmul.f32 %v650, 1.442695
        %v707 = vpow.pop %v706
        %v708 = vmul.f32 %v651, 1.442695
        %v709 = vpow.pop %v708
        %v710 = vmul.f32 %v652, 1.442695
        %v711 = vpow.pop %v710
        %v712 = vmul.f32 %v653, 1.442695
        %v713 = vpow.pop %v712
        %v714 = vmul.f32 %v654, 1.442695
        %v715 = vpow.pop %v714
        %v716 = vmul.f32 %v655, 1.442695
        %v717 = vpow.pop %v716
        %v718 = vmul.f32 %v656, 1.442695
        %v719 = vpow.pop %v718
        %v720 = vmul.f32 %v657, 1.442695
        %v721 = vpow.pop %v720
        %v722 = vpack.c.bf16 %v311, %v308
        %v723 = vpack.c.bf16 %v335, %v332
        %v724 = vpack.c.bf16 %v316, %v313
        %v725 = vpack.c.bf16 %v340, %v337
        %v726 = vpack.c.bf16 %v318, %v318
        %v727 = vpack.c.bf16 %v342, %v342
        %v728 = vpack.c.bf16 %v663, %v659
        %v729 = vpack.c.bf16 %v665, %v661
        %v730 = vpack.c.bf16 %v671, %v667
        %v731 = vpack.c.bf16 %v673, %v669
        %v732 = vpack.c.bf16 %v679, %v675
        %v733 = vpack.c.bf16 %v681, %v677
        %v734 = vpack.c.bf16 %v687, %v683
        %v735 = vpack.c.bf16 %v689, %v685
        %v736 = vpack.c.bf16 %v695, %v691
        %v737 = vpack.c.bf16 %v697, %v693
        %v738 = vpack.c.bf16 %v703, %v699
        %v739 = vpack.c.bf16 %v705, %v701
        %v740 = vpack.c.bf16 %v711, %v707
        %v741 = vpack.c.bf16 %v713, %v709
        %v742 = vpack.c.bf16 %v719, %v715
        %v743 = vpack.c.bf16 %v721, %v717
        %744 = vmatpush.bf16.xpose.msra.mxu0 %v742
        %745 = vmatpush.bf16.xpose.msra.mxu0 %v740
        %746 = vmatpush.bf16.xpose.msra.mxu0 %v738
        %747 = vmatpush.bf16.xpose.msra.mxu0 %v736
        %748 = vmatpush.bf16.xpose.msra.mxu0 %v734
        %749 = vmatpush.bf16.xpose.msra.mxu0 %v732
        %750 = vmatpush.bf16.xpose.msra.mxu0 %v730
        %751 = vmatpush.bf16.xpose.msra.mxu0 %v728
        %752 = vmatmul.bf16.gmra.mxu0 %v722
        %v753 = vpop.f32.mrf.mxu0
        %v754 = vadd.f32 0.0, %v753
        %v755 = vpop.f32.mrf.mxu0
        %v756 = vadd.f32 0.0, %v755
        %757 = vmatmul.bf16.gmra.mxu0 %v724
        %v758 = vpop.f32.mrf.mxu0
        %v759 = vadd.f32 0.0, %v758
        %v760 = vpop.f32.mrf.mxu0
        %v761 = vadd.f32 0.0, %v760
        %762 = vmatmul.bf16.gmra.mxu0 %v726
        %v763 = vpop.f32.mrf.mxu0
        %v764 = vadd.f32 0.0, %v763
        %v765 = vpop.f32.mrf.mxu0
        %766 = vdwg.mxu0
        %767 = vmatpush.bf16.xpose.msra.mxu0 %v743
        %768 = vmatpush.bf16.xpose.msra.mxu0 %v741
        %769 = vmatpush.bf16.xpose.msra.mxu0 %v739
        %770 = vmatpush.bf16.xpose.msra.mxu0 %v737
        %771 = vmatpush.bf16.xpose.msra.mxu0 %v735
        %772 = vmatpush.bf16.xpose.msra.mxu0 %v733
        %773 = vmatpush.bf16.xpose.msra.mxu0 %v731
        %774 = vmatpush.bf16.xpose.msra.mxu0 %v729
        %775 = vmatmul.bf16.gmra.mxu0 %v723
        %v776 = vpop.f32.mrf.mxu0
        %v777 = vadd.f32 %v754, %v776
        %v778 = vpop.f32.mrf.mxu0
        %v779 = vadd.f32 %v756, %v778
        %780 = vmatmul.bf16.gmra.mxu0 %v725
        %v781 = vpop.f32.mrf.mxu0
        %v782 = vadd.f32 %v759, %v781
        %v783 = vpop.f32.mrf.mxu0
        %v784 = vadd.f32 %v761, %v783
        %785 = vmatmul.bf16.gmra.mxu0 %v727
        %v786 = vpop.f32.mrf.mxu0
        %v787 = vadd.f32 %v764, %v786
        %v788 = vpop.f32.mrf.mxu0
        %789 = vdwg.mxu0
        %v790 = vrcp.pop %v787
        %v791 = vperm.slane %v790, 0
        %v792 = vmul.f32 %v777, %v791
        %v793 = vmul.f32 %v779, %v791
        %v794 = vmul.f32 %v782, %v791
        %v795 = vmul.f32 %v784, %v791
        %v796 = vadd.f32 %v792, %v219
        %v797 = vadd.f32 %v793, %v220
        %v798 = vadd.f32 %v794, %v221
        %v799 = vadd.f32 %v795, %v222
        %800 = vst [vmem:[%s204] sm:$0xff] %v796
        %801 = vst [vmem:[%s204 + $0x8] sm:$0xff] %v797
        %802 = vst [vmem:[%s204 + $0x10] sm:$0xff] %v798
        %803 = vst [vmem:[%s204 + $0x18] sm:$0xff] %v799
        %s804 = sand.u32 %s110, 1
        %s805 = scalar_lea.sflag [#allocation4], %s804
        %s806 = sand.u32 %s110, 1
        %s807 = smul.addr %s806, 32
        %s808 = scalar_lea.vmem [#allocation5], %s807
        // Predicated region
        $region37: #{tpu_custom_call.1} parent=31 // pred_check
          %p809 = pneg %p120
        $region38: #{tpu_custom_call.1} parent=31 // pred_check_branch
          %811 = sbr.rel (%p809) target = $region40
        $region39: #{tpu_custom_call.1} parent=31 // pred_region
          %813 = vsyncadd %s805, 0
          %s814 = smul.addr %s24, 8
          %s815 = sadd.s32 %s25, %s814
          %s816 = smul.addr %s815, 8
          %s817 = scalar_lea.hbm %s3, %s816
          %s818 = sshll.u32 %s808, 4
          %s819 = int_to_ptr.vmem [resolvable:$true] %s818
          %s820 = sshll.u32 %s817, 4
          %s821 = int_to_ptr.hbm [resolvable:$true] %s820
          %826 = dma.vmem_to_hbm [thread:$0]  %s819, 512, %s821, %s805, 128, 256, 8
        $region40: #{tpu_custom_call.1} parent=31 // pred_fallthru
          _
      $region32: #{tpu_custom_call.1} parent=5 // pred_fallthru
        _
      %p827 = scmp.le.s32.totalorder 2, %s15
      // Predicated region
      $region41: #{tpu_custom_call.1} parent=5 // pred_check
        %p828 = pneg %p827
      $region42: #{tpu_custom_call.1} parent=5 // pred_check_branch
        %830 = sbr.rel (%p828) target = $region44
      $region43: #{tpu_custom_call.1} parent=5 // pred_region
        %s831 = ssub.s32 %s15, 2
        // Predicated region
        $region45: #{tpu_custom_call.1} parent=43 // pred_check
          %p832 = pneg %p126
        $region46: #{tpu_custom_call.1} parent=43 // pred_check_branch
          %834 = sbr.rel (%p832) target = $region48
        $region47: #{tpu_custom_call.1} parent=43 // pred_region
          %s835 = sand.u32 %s111, 1
          %s836 = scalar_lea.sflag [#allocation4], %s835
          %s837 = sand.u32 %s111, 1
          %s838 = smul.addr %s837, 32
          %s839 = scalar_lea.vmem [#allocation5], %s838
          %841 = dma.done %s836, 512
        $region48: #{tpu_custom_call.1} parent=43 // pred_fallthru
          _
      $region44: #{tpu_custom_call.1} parent=5 // pred_fallthru
        _
    $region6: #{tpu_custom_call.1} parent=1 // loop_footer
      %s19 = sadd.s32 1, %s15
    $region7: #{tpu_custom_call.1} parent=1 // loop_footer_branch
      %14 = sbr.rel target = $region3
    $region8: #{tpu_custom_call.1} parent=1 // loop_exit
      _
    %842 = vsyncpa [#allocation3], 1
    %s843 = scalar_lea.sflag [#allocation3], 1
    %844 = vsyncpa %s843, 1
    %845 = vsyncpa [#allocation4], 1
    %s846 = scalar_lea.sflag [#allocation4], 1
    %847 = vsyncpa %s846, 1

</llo_original>
